<compile_context>
chip_gen: v7x
topology: tpu7x:2x2x1
jax: 0.10.0
libtpu: 0.0.40
codegen_flags: <defaults>
</compile_context>

<pallas_src>
import functools

import jax
import jax.numpy as jnp
from jax import lax
from jax.experimental import pallas as pl
from jax.experimental.pallas import tpu as pltpu


def _round_up(x, m):
    return (x + m - 1) // m * m


# --------------------------------------------------------------------------
# LayerNorm kernel: one grid step normalizes a (block_rows, d_model) tile.
# --------------------------------------------------------------------------
def _layernorm_kernel(x_ref, gb_ref, o_ref, *, eps, inv_d):
    x = x_ref[...].astype(jnp.float32)                     # (BR, D) f32
    # Both row reductions issued back-to-back (no centered intermediate feeding
    # the second reduce) -> shorter VALU chain; reductions go to the XLU.
    s1 = jnp.sum(x, axis=-1, keepdims=True)
    s2 = jnp.sum(x * x, axis=-1, keepdims=True)
    mean = s1 * jnp.float32(inv_d)
    var = jnp.maximum(s2 * jnp.float32(inv_d) - mean * mean, 0.0)
    inv = lax.rsqrt(var + jnp.float32(eps))                # EUP rsqrt (free slot)
    g = gb_ref[0:1, :]                                     # (1, D)
    b = gb_ref[1:2, :]                                     # (1, D)
    y = (x - mean) * inv * g + b
    o_ref[...] = y.astype(o_ref.dtype)


def layer_norm(x, gamma, beta, *, eps=1e-5, target_tile_bytes=4 << 20,
               max_rows_per_tile=None):
    """Row-tiled Pallas LayerNorm over the last axis of x."""
    orig_shape = x.shape
    d = orig_shape[-1]

    # Lane-dense 2-D slab: (rows, d_model).  Last block dim is the full D.
    x2 = x.reshape(-1, d)
    rows = x2.shape[0]

    in_bytes = jnp.dtype(x.dtype).itemsize
    out_bytes = in_bytes

    # VMEM bytes needed per (row, d) element:
    #   double-buffered input tile + double-buffered output tile
    #   + in-kernel f32 intermediates (x f32 copy + y).
    per_elem_vmem = 2 * in_bytes + 2 * out_bytes + 2 * 4
    vmem_cap_bytes = 44 << 20                              # headroom inside v7x 64 MiB

    # Row tile from the bandwidth target (~4 MiB HBM per step), capped by the
    # VMEM budget, by an optional caller override, and by the actual row count.
    br = max(1, target_tile_bytes // (d * in_bytes))
    br = min(br, max(1, vmem_cap_bytes // (d * per_elem_vmem)))
    if max_rows_per_tile is not None:
        br = min(br, max_rows_per_tile)
    br = min(br, _round_up(rows, 8))
    br = max(8, _round_up(br, 8))                          # sublane multiple

    grid = (pl.cdiv(rows, br),)                            # partial last block OK:
    # tail rows of the last block read stale VMEM but their writes are masked;
    # the per-row reduction is along D only so valid rows are unaffected.

    # Pack gamma/beta into one resident (2, D) f32 operand.
    gb = jnp.stack([gamma.reshape(d), beta.reshape(d)]).astype(jnp.float32)

    vmem_need = per_elem_vmem * br * d + 2 * d * 4
    vmem_limit = int(min(max(vmem_need + (4 << 20), 32 << 20), 56 << 20))

    cost = pl.CostEstimate(
        flops=8 * rows * d,
        transcendentals=rows,
        bytes_accessed=rows * d * (in_bytes + out_bytes) + 2 * d * 4,
    )

    out = pl.pallas_call(
        functools.partial(_layernorm_kernel, eps=eps, inv_d=1.0 / d),
        out_shape=jax.ShapeDtypeStruct((rows, d), x.dtype),
        grid=grid,
        in_specs=[
            pl.BlockSpec((br, d), lambda i: (i, 0)),       # x tile, pipelined
            pl.BlockSpec((2, d), lambda i: (0, 0)),        # gamma/beta, resident
        ],
        out_specs=pl.BlockSpec((br, d), lambda i: (i, 0)),
        compiler_params=pltpu.CompilerParams(
            dimension_semantics=("parallel",),             # megacore on v7x
            vmem_limit_bytes=vmem_limit,
        ),
        cost_estimate=cost,
    )(x2, gb)

    return out.reshape(orig_shape)


# --------------------------------------------------------------------------
# PreNorm forward: Pallas norm -> fn -> (optional) Pallas sandwich norm.
# --------------------------------------------------------------------------
def pre_norm_forward(x, params, fn, *, sandwich_norm=False, eps=1e-5, **fn_kwargs):
    # x = self.norm(x)
    y = layer_norm(x, params["norm"]["gamma"], params["norm"]["beta"], eps=eps)
    # x = self.fn(x, **kwargs)
    # TODO(synk): `fn` is an arbitrary wrapped sub-module; executed as a JAX
    #             callable rather than fused into the Pallas kernel (see header).
    y = fn(y, **fn_kwargs)
    if sandwich_norm:
        # x = self.norm_out(x)
        y = layer_norm(y, params["norm_out"]["gamma"],
                       params["norm_out"]["beta"], eps=eps)
    return y


# --------------------------------------------------------------------------
# Pure-JAX reference for validation.
# --------------------------------------------------------------------------
def _ref_layer_norm(x, gamma, beta, eps=1e-5):
    mean = jnp.mean(x, axis=-1, keepdims=True)
    var = jnp.mean((x - mean) ** 2, axis=-1, keepdims=True)
    return (x - mean) * lax.rsqrt(var + eps) * gamma + beta


if __name__ == "__main__":
    key = jax.random.PRNGKey(0)
    k_x, k_g, k_b, k_g2, k_b2, k_w1, k_w2, k_xr, k_xm = jax.random.split(key, 9)

    # Small demo shapes, lane-aligned feature dim.
    B, T, D = 2, 16, 128
    x = jax.random.normal(k_x, (B, T, D), dtype=jnp.float32)

    params = {
        "norm": {
            "gamma": 1.0 + 0.1 * jax.random.normal(k_g, (D,), jnp.float32),
            "beta": 0.1 * jax.random.normal(k_b, (D,), jnp.float32),
        },
        "norm_out": {
            "gamma": 1.0 + 0.1 * jax.random.normal(k_g2, (D,), jnp.float32),
            "beta": 0.1 * jax.random.normal(k_b2, (D,), jnp.float32),
        },
    }

    # Example `fn` (stand-in for the wrapped sub-module): a small GELU MLP.
    w1 = 0.02 * jax.random.normal(k_w1, (D, 2 * D), jnp.float32)
    w2 = 0.02 * jax.random.normal(k_w2, (2 * D, D), jnp.float32)

    def fn(h):
        return jax.nn.gelu(h @ w1) @ w2

    # 1) sandwich_norm=True exercises both norm kernels.
    out = pre_norm_forward(x, params, fn, sandwich_norm=True)
    out = jax.block_until_ready(out)

    def reference(xi):
        y = _ref_layer_norm(xi, params["norm"]["gamma"], params["norm"]["beta"])
        y = fn(y)
        return _ref_layer_norm(y, params["norm_out"]["gamma"],
                               params["norm_out"]["beta"])

    ref = jax.block_until_ready(reference(x))
    assert out.shape == x.shape
    assert jnp.allclose(out, ref, atol=1e-4, rtol=1e-4), \
        float(jnp.max(jnp.abs(out - ref)))

    # 2) Ragged row count (3*10 = 30 rows) -> single partial block.
    xr = jax.random.normal(k_xr, (3, 10, D), dtype=jnp.float32)
    out_r = jax.block_until_ready(
        pre_norm_forward(xr, params, fn, sandwich_norm=False))
    ref_r = fn(_ref_layer_norm(xr, params["norm"]["gamma"],
                               params["norm"]["beta"]))
    assert jnp.allclose(out_r, ref_r, atol=1e-4, rtol=1e-4)

    # 3) Multi-tile grid + partial last block (100 rows, forced 16-row tiles)
    #    exercises the no-pad masked-writeback path.
    xm = jax.random.normal(k_xm, (4, 25, D), dtype=jnp.float32)
    out_m = jax.block_until_ready(
        layer_norm(xm, params["norm"]["gamma"], params["norm"]["beta"],
                   max_rows_per_tile=16))
    ref_m = _ref_layer_norm(xm, params["norm"]["gamma"], params["norm"]["beta"])
    assert jnp.allclose(out_m, ref_m, atol=1e-4, rtol=1e-4)

    print("KERNEL_OK")
</pallas_src>

<mosaic_0001>
module attributes {stable_mosaic.version = 11 : i64} {
  func.func @_layernorm_kernel(%arg0: i32, %arg1: memref<32x128xf32, #tpu.memory_space<vmem>>, %arg2: memref<2x128xf32, #tpu.memory_space<vmem>>, %arg3: memref<32x128xf32, #tpu.memory_space<vmem>>) attributes {dimension_semantics = [#tpu.dimension_semantics<parallel>], iteration_bounds = array<i64: 1>, scalar_prefetch = 0 : i64, scratch_operands = 0 : i64, tpu.core_type = #tpu.core_type<tc>, window_params = [{transform_indices = @transform_0, window_bounds = array<i64: 32, 128>}, {pipeline_mode = #tpu.pipeline_mode<synchronous>, transform_indices = @transform_1, window_bounds = array<i64: 2, 128>}, {transform_indices = @transform_2, window_bounds = array<i64: 32, 128>}]} {
    %c0 = arith.constant 0 : index
    %c0_0 = arith.constant 0 : index
    %0 = vector.load %arg1[%c0, %c0_0] : memref<32x128xf32, #tpu.memory_space<vmem>>, vector<32x128xf32>
    %cst = arith.constant dense<0.000000e+00> : vector<32xf32>
    %1 = vector.multi_reduction <add>, %0, %cst [1] : vector<32x128xf32> to vector<32xf32>
    %2 = vector.shape_cast %1 : vector<32xf32> to vector<32x1xf32>
    %3 = arith.mulf %0, %0 : vector<32x128xf32>
    %cst_1 = arith.constant dense<0.000000e+00> : vector<32xf32>
    %4 = vector.multi_reduction <add>, %3, %cst_1 [1] : vector<32x128xf32> to vector<32xf32>
    %5 = vector.shape_cast %4 : vector<32xf32> to vector<32x1xf32>
    %cst_2 = arith.constant 7.812500e-03 : f32
    %6 = vector.broadcast %cst_2 : f32 to vector<32x1xf32>
    %7 = arith.mulf %2, %6 : vector<32x1xf32>
    %cst_3 = arith.constant 7.812500e-03 : f32
    %8 = vector.broadcast %cst_3 : f32 to vector<32x1xf32>
    %9 = arith.mulf %5, %8 : vector<32x1xf32>
    %10 = arith.mulf %7, %7 : vector<32x1xf32>
    %11 = arith.subf %9, %10 : vector<32x1xf32>
    %cst_4 = arith.constant 0.000000e+00 : f32
    %12 = vector.broadcast %cst_4 : f32 to vector<32x1xf32>
    %13 = arith.maximumf %11, %12 : vector<32x1xf32>
    %cst_5 = arith.constant 9.99999974E-6 : f32
    %14 = vector.broadcast %cst_5 : f32 to vector<32x1xf32>
    %15 = arith.addf %13, %14 : vector<32x1xf32>
    %16 = math.rsqrt %15 : vector<32x1xf32>
    %c0_6 = arith.constant 0 : index
    %c0_7 = arith.constant 0 : index
    %17 = vector.load %arg2[%c0_6, %c0_7] : memref<2x128xf32, #tpu.memory_space<vmem>>, vector<1x128xf32>
    %c1 = arith.constant 1 : index
    %c0_8 = arith.constant 0 : index
    %18 = vector.load %arg2[%c1, %c0_8] : memref<2x128xf32, #tpu.memory_space<vmem>>, vector<1x128xf32>
    %19 = vector.broadcast %7 : vector<32x1xf32> to vector<32x128xf32>
    %20 = arith.subf %0, %19 : vector<32x128xf32>
    %21 = vector.broadcast %16 : vector<32x1xf32> to vector<32x128xf32>
    %22 = arith.mulf %20, %21 : vector<32x128xf32>
    %23 = vector.broadcast %17 : vector<1x128xf32> to vector<32x128xf32>
    %24 = arith.mulf %22, %23 : vector<32x128xf32>
    %25 = vector.broadcast %18 : vector<1x128xf32> to vector<32x128xf32>
    %26 = arith.addf %24, %25 : vector<32x128xf32>
    %c0_9 = arith.constant 0 : index
    %c0_10 = arith.constant 0 : index
    %27 = vector.load %arg3[%c0_9, %c0_10] : memref<32x128xf32, #tpu.memory_space<vmem>>, vector<32x128xf32>
    tpu.vector_store %arg3[%c0_9, %c0_10], %26 {strides = array<i32>} : memref<32x128xf32, #tpu.memory_space<vmem>>, vector<32x128xf32>,
    return
  }
  func.func @transform_0(%arg0: i32) -> (i32, i32) {
    %c0_i32 = arith.constant 0 : i32
    %c0_i32_0 = arith.constant 0 : i32
    return %arg0, %c0_i32 : i32, i32
  }
  func.func @transform_1(%arg0: i32) -> (i32, i32) {
    %c0_i32 = arith.constant 0 : i32
    %c0_i32_0 = arith.constant 0 : i32
    %c0_i32_1 = arith.constant 0 : i32
    return %c0_i32, %c0_i32_0 : i32, i32
  }
  func.func @transform_2(%arg0: i32) -> (i32, i32) {
    %c0_i32 = arith.constant 0 : i32
    %c0_i32_0 = arith.constant 0 : i32
    return %arg0, %c0_i32 : i32, i32
  }
}

</mosaic_0001>

<llo_original>
// kernel: tpu_custom_call.1
$region0: #{tpu_custom_call.1}
  #allocation0 [shape = 'u32[]', space=smem, size = 0x4, offset = 0x4, fixed_abs, tag = 'smem constant byte address 0x4 - core index']
  #allocation1 [shape = 'u32[144,128]{1,0:T(1,128)}', space=vmem, size = 0x12000, scoped, tag = 'internal scratch']
  %s0 = inlined_call_operand.hbm [shape: f32[32,128], index: 0, kind: input, shape index: {}]
  %s1 = inlined_call_operand.vmem [shape: f32[2,128], index: 1, kind: input, shape index: {}]
  %s2 = inlined_call_operand.hbm [shape: f32[32,128], index: 2, kind: output, shape index: {}]
  %s3 = sld [smem:[#allocation0]]
  $region22: #{tpu_custom_call.1} parent=0
    _
  %s5 = ssub.s32 1, %s3
  %s6 = scalar_select 0, %s5, %s3
  $region1: #{tpu_custom_call.1} parent=0
    #allocation2 [shape = 'u8[16384]{0}', space=vmem, size = 0x4000, scoped, tag = 'input window, operand 0, single buffered']
    #allocation3 [shape = 's32[1]{0}', space=sflag, size = 0x4, scoped, tag = 'scoped memory for tpu_custom_call.1']
    #allocation4 [shape = 's32[1]{0}', space=sflag, size = 0x4, scoped, tag = 'scoped memory for tpu_custom_call.1']
    #allocation5 [shape = 'u8[16384]{0}', space=vmem, size = 0x4000, scoped, tag = 'output window, operand 0, single buffered']
    %7 = vsyncpa [#allocation3], 0
    %8 = vsyncpa [#allocation4], 0
    // Predicated region
    $region2: #{tpu_custom_call.1} parent=1 // pred_check
      _
    $region3: #{tpu_custom_call.1} parent=1 // pred_check_branch
      %10 = sbr.rel (0) target = $region5
    $region4: #{tpu_custom_call.1} parent=1 // pred_region
      %s12 = ssub.s32 512, 512
      %13 = vsyncadd [#allocation3], %s12
      %s14 = sshll.u32 [#allocation2], 4
      %s15 = int_to_ptr.vmem [resolvable:$true] %s14
      %20 = dma.hbm_to_vmem [thread:$0]  %s0, 512, %s15, [#allocation3], 128, 128, 8
    $region5: #{tpu_custom_call.1} parent=1 // pred_fallthru
      _
    // Predicated region
    $region6: #{tpu_custom_call.1} parent=1 // pred_check
      _
    $region7: #{tpu_custom_call.1} parent=1 // pred_check_branch
      %22 = sbr.rel (0) target = $region9
    $region8: #{tpu_custom_call.1} parent=1 // pred_region
      _
    $region9: #{tpu_custom_call.1} parent=1 // pred_fallthru
      _
    // Predicated region
    $region10: #{tpu_custom_call.1} parent=1 // pred_check
      _
    $region11: #{tpu_custom_call.1} parent=1 // pred_check_branch
      %24 = sbr.rel (0) target = $region13
    $region12: #{tpu_custom_call.1} parent=1 // pred_region
      %25 = dma.done [#allocation3], 512
    $region13: #{tpu_custom_call.1} parent=1 // pred_fallthru
      _
    %v26 = vld [vmem:[#allocation2] sm:$0xff]
    %v27 = vld [vmem:[#allocation2 + $0x8] sm:$0xff]
    %v28 = vld [vmem:[#allocation2 + $0x10] sm:$0xff]
    %v29 = vld [vmem:[#allocation2 + $0x18] sm:$0xff]
    %30 = vadd.xlane.f32.xlu0 %v26
    %v31 = vpop.xlane.xlu0 %30
    %32 = vadd.xlane.f32.xlu0 %v27
    %v33 = vpop.xlane.xlu0 %32
    %34 = vadd.xlane.f32.xlu0 %v28
    %v35 = vpop.xlane.xlu0 %34
    %36 = vadd.xlane.f32.xlu0 %v29
    %v37 = vpop.xlane.xlu0 %36
    %v38 = vmul.f32 %v26, %v26
    %v39 = vmul.f32 %v27, %v27
    %v40 = vmul.f32 %v28, %v28
    %v41 = vmul.f32 %v29, %v29
    %42 = vadd.xlane.f32.xlu0 %v38
    %v43 = vpop.xlane.xlu0 %42
    %44 = vadd.xlane.f32.xlu0 %v39
    %v45 = vpop.xlane.xlu0 %44
    %46 = vadd.xlane.f32.xlu0 %v40
    %v47 = vpop.xlane.xlu0 %46
    %48 = vadd.xlane.f32.xlu0 %v41
    %v49 = vpop.xlane.xlu0 %48
    %v50 = vmul.f32 %v31, 0.0078125
    %v51 = vmul.f32 %v33, 0.0078125
    %v52 = vmul.f32 %v35, 0.0078125
    %v53 = vmul.f32 %v37, 0.0078125
    %v54 = vmul.f32 %v43, 0.0078125
    %v55 = vmul.f32 %v45, 0.0078125
    %v56 = vmul.f32 %v47, 0.0078125
    %v57 = vmul.f32 %v49, 0.0078125
    %v58 = vmul.f32 %v50, %v50
    %v59 = vmul.f32 %v51, %v51
    %v60 = vmul.f32 %v52, %v52
    %v61 = vmul.f32 %v53, %v53
    %v62 = vsub.f32 %v54, %v58
    %v63 = vsub.f32 %v55, %v59
    %v64 = vsub.f32 %v56, %v60
    %v65 = vsub.f32 %v57, %v61
    %v66 = vmax.f32 %v62, 0.0
    %v67 = vmax.f32 %v63, 0.0
    %v68 = vmax.f32 %v64, 0.0
    %v69 = vmax.f32 %v65, 0.0
    %v70 = vadd.f32 %v66, 1e-05
    %v71 = vadd.f32 %v67, 1e-05
    %v72 = vadd.f32 %v68, 1e-05
    %v73 = vadd.f32 %v69, 1e-05
    %v74 = vrsqrt.pop %v70
    %v75 = vrsqrt.pop %v71
    %v76 = vrsqrt.pop %v72
    %v77 = vrsqrt.pop %v73
    %v78 = vld [vmem:[%s1] sm:$0x1]
    %v79 = vld [vmem:[%s1 + $0x1] sm:$0x1]
    %v80 = vsub.f32 %v26, %v50
    %v81 = vsub.f32 %v27, %v51
    %v82 = vsub.f32 %v28, %v52
    %v83 = vsub.f32 %v29, %v53
    %v84 = vmul.f32 %v80, %v74
    %v85 = vmul.f32 %v81, %v75
    %v86 = vmul.f32 %v82, %v76
    %v87 = vmul.f32 %v83, %v77
    %v88 = vlaneseq
    %v89 = vshrl.u32 %v88, 7
    %v90 = vsub.s32 0, %v89
    %v91 = vrot.slane %v78, %v90
    %v92 = vmul.f32 %v84, %v91
    %v93 = vmul.f32 %v85, %v91
    %v94 = vmul.f32 %v86, %v91
    %v95 = vmul.f32 %v87, %v91
    %v96 = vlaneseq
    %v97 = vshrl.u32 %v96, 7
    %v98 = vsub.s32 0, %v97
    %v99 = vrot.slane %v79, %v98
    %v100 = vadd.f32 %v92, %v99
    %v101 = vadd.f32 %v93, %v99
    %v102 = vadd.f32 %v94, %v99
    %v103 = vadd.f32 %v95, %v99
    %104 = vst [vmem:[#allocation5] sm:$0xff] %v100
    %105 = vst [vmem:[#allocation5 + $0x8] sm:$0xff] %v101
    %106 = vst [vmem:[#allocation5 + $0x10] sm:$0xff] %v102
    %107 = vst [vmem:[#allocation5 + $0x18] sm:$0xff] %v103
    // Predicated region
    $region14: #{tpu_custom_call.1} parent=1 // pred_check
      _
    $region15: #{tpu_custom_call.1} parent=1 // pred_check_branch
      %109 = sbr.rel (0) target = $region17
    $region16: #{tpu_custom_call.1} parent=1 // pred_region
      %s111 = ssub.s32 512, 512
      %112 = vsyncadd [#allocation4], %s111
      %s113 = sshll.u32 [#allocation5], 4
      %s114 = int_to_ptr.vmem [resolvable:$true] %s113
      %119 = dma.vmem_to_hbm [thread:$0]  %s114, 512, %s2, [#allocation4], 128, 128, 8
    $region17: #{tpu_custom_call.1} parent=1 // pred_fallthru
      _
    // Predicated region
    $region18: #{tpu_custom_call.1} parent=1 // pred_check
      _
    $region19: #{tpu_custom_call.1} parent=1 // pred_check_branch
      %121 = sbr.rel (0) target = $region21
    $region20: #{tpu_custom_call.1} parent=1 // pred_region
      %122 = dma.done [#allocation4], 512
    $region21: #{tpu_custom_call.1} parent=1 // pred_fallthru
      _
    %123 = vsyncpa [#allocation3], 1
    %124 = vsyncpa [#allocation4], 1

</llo_original>
